<compile_context>
chip_gen: v7x
topology: tpu7x:2x2x1
jax: 0.10.0
libtpu: 0.0.40
codegen_flags: <defaults>
</compile_context>

<pallas_src>
import functools
import math

import jax
import jax.numpy as jnp
from jax.experimental import pallas as pl
from jax.experimental.pallas import tpu as pltpu


def _round_up(x, m):
    return (x + m - 1) // m * m


# ----------------------------- Pallas kernel ------------------------------ #

def _fused_mlp_kernel(*refs, num_layers):
    """One grid step computes the FULL MLP for one (tm, C_in_pad) row tile.

    refs = (x_ref, w0_ref, b0_ref, ..., w{L-1}_ref, b{L-1}_ref, o_ref)
    Weights/biases are VMEM-resident (constant index_map); intermediate
    activations never touch HBM.
    """
    x_ref = refs[0]
    o_ref = refs[-1]
    wb = refs[1:-1]

    h = x_ref[...]
    for li in range(num_layers):                       # static unroll
        w = wb[2 * li][...]                            # (K_pad, N_pad)
        b = wb[2 * li + 1][...]                        # (1, N_pad) -> broadcast
        h = jnp.dot(h, w, preferred_element_type=jnp.float32) + b
        if li != num_layers - 1:
            h = jnp.maximum(h, 0.0)                    # ReLU between layers
    o_ref[...] = h.astype(o_ref.dtype)


# ------------------------------ wrapper ------------------------------------ #

@functools.partial(jax.jit, static_argnames=("block_m",))
def mlp_forward(params, x, block_m=256):
    """params: list of (W[K_in, K_out] already transposed, b[K_out]).
    x: [M, C_in] -> [M, C_out].  Eval mode, Normalization='None'."""
    num_layers = len(params)
    M, C_in = x.shape
    C_out = params[-1][0].shape[1]

    # ---- pad to hardware-friendly shapes (rows -> mult of 8, lanes -> 128) --
    tm = min(block_m, _round_up(M, 8))
    M_pad = _round_up(M, tm)
    C_in_pad = _round_up(C_in, 128)

    x_p = jnp.zeros((M_pad, C_in_pad), x.dtype).at[:M, :C_in].set(x)

    padded = []
    k_pad = C_in_pad
    for (w, b) in params:
        K, N = w.shape
        n_pad = _round_up(N, 128)
        w_p = jnp.zeros((k_pad, n_pad), w.dtype).at[:K, :N].set(w)
        b_p = jnp.zeros((1, n_pad), b.dtype).at[0, :N].set(b)
        padded.append((w_p, b_p))
        k_pad = n_pad
    C_out_pad = k_pad

    # ---- specs: x / out tiled over M; weights & biases VMEM-resident --------
    in_specs = [pl.BlockSpec((tm, C_in_pad), lambda i: (i, 0))]
    flat_wb = []
    for (w_p, b_p) in padded:
        kp, np_ = w_p.shape
        in_specs.append(pl.BlockSpec((kp, np_), lambda i: (0, 0)))
        in_specs.append(pl.BlockSpec((1, np_), lambda i: (0, 0)))
        flat_wb.extend([w_p, b_p])

    kernel = functools.partial(_fused_mlp_kernel, num_layers=num_layers)
    out_p = pl.pallas_call(
        kernel,
        out_shape=jax.ShapeDtypeStruct((M_pad, C_out_pad), x.dtype),
        grid=(M_pad // tm,),
        in_specs=in_specs,
        out_specs=pl.BlockSpec((tm, C_out_pad), lambda i: (i, 0)),
        compiler_params=pltpu.CompilerParams(
            dimension_semantics=("parallel",),          # megacore-shardable M
            vmem_limit_bytes=32 * 1024 * 1024,          # safe on v5e/v6e/v7x
        ),
    )(x_p, *flat_wb)

    return out_p[:M, :C_out]


# ------------------------------- init -------------------------------------- #

def init_mlp_params(key, in_channels, hidden_channels, out_channels,
                    num_layers, dtype=jnp.float32):
    """Mirrors nn.Linear.reset_parameters (uniform +-1/sqrt(fan_in)).
    Weights stored pre-transposed: [fan_in, fan_out]."""
    dims = [in_channels] + [hidden_channels] * (num_layers - 1) + [out_channels]
    params = []
    for li in range(num_layers):
        fan_in, fan_out = dims[li], dims[li + 1]
        key, kw, kb = jax.random.split(key, 3)
        bound = 1.0 / math.sqrt(fan_in)
        w = jax.random.uniform(kw, (fan_in, fan_out), dtype,
                               minval=-bound, maxval=bound)
        b = jax.random.uniform(kb, (fan_out,), dtype,
                               minval=-bound, maxval=bound)
        params.append((w, b))
    return params


# -------------------------------- main -------------------------------------- #

if __name__ == "__main__":
    key = jax.random.PRNGKey(0)
    k_param, k_x = jax.random.split(key)

    in_channels = 32
    hidden_channels = 32
    out_channels = 8
    num_layers = 3
    n_rows = 512          # > block_m so the M grid actually tiles & pipelines

    params = init_mlp_params(k_param, in_channels, hidden_channels,
                             out_channels, num_layers)
    x = jax.random.normal(k_x, (n_rows, in_channels), dtype=jnp.float32)

    out = mlp_forward(params, x)
    out = jax.block_until_ready(out)

    # pure-JAX reference (Normalization='None', eval mode => dropout identity)
    ref = x
    for i, (w, b) in enumerate(params):
        ref = ref @ w + b
        if i != num_layers - 1:
            ref = jnp.maximum(ref, 0.0)

    assert out.shape == (n_rows, out_channels)
    assert jnp.allclose(out, ref, atol=1e-4, rtol=1e-4)

    print("KERNEL_OK")
</pallas_src>

<mosaic_0001>
module attributes {stable_mosaic.version = 11 : i64} {
  func.func @_fused_mlp_kernel(%arg0: i32, %arg1: memref<256x128xf32, #tpu.memory_space<vmem>>, %arg2: memref<128x128xf32, #tpu.memory_space<vmem>>, %arg3: memref<1x128xf32, #tpu.memory_space<vmem>>, %arg4: memref<128x128xf32, #tpu.memory_space<vmem>>, %arg5: memref<1x128xf32, #tpu.memory_space<vmem>>, %arg6: memref<128x128xf32, #tpu.memory_space<vmem>>, %arg7: memref<1x128xf32, #tpu.memory_space<vmem>>, %arg8: memref<256x128xf32, #tpu.memory_space<vmem>>) attributes {dimension_semantics = [#tpu.dimension_semantics<parallel>], iteration_bounds = array<i64: 2>, scalar_prefetch = 0 : i64, scratch_operands = 0 : i64, tpu.core_type = #tpu.core_type<tc>, window_params = [{transform_indices = @transform_0, window_bounds = array<i64: 256, 128>}, {pipeline_mode = #tpu.pipeline_mode<synchronous>, transform_indices = @transform_1, window_bounds = array<i64: 128, 128>}, {pipeline_mode = #tpu.pipeline_mode<synchronous>, transform_indices = @transform_2, window_bounds = array<i64: 1, 128>}, {pipeline_mode = #tpu.pipeline_mode<synchronous>, transform_indices = @transform_3, window_bounds = array<i64: 128, 128>}, {pipeline_mode = #tpu.pipeline_mode<synchronous>, transform_indices = @transform_4, window_bounds = array<i64: 1, 128>}, {pipeline_mode = #tpu.pipeline_mode<synchronous>, transform_indices = @transform_5, window_bounds = array<i64: 128, 128>}, {pipeline_mode = #tpu.pipeline_mode<synchronous>, transform_indices = @transform_6, window_bounds = array<i64: 1, 128>}, {transform_indices = @transform_7, window_bounds = array<i64: 256, 128>}]} {
    %c0 = arith.constant 0 : index
    %c0_0 = arith.constant 0 : index
    %0 = vector.load %arg1[%c0, %c0_0] : memref<256x128xf32, #tpu.memory_space<vmem>>, vector<256x128xf32>
    %c0_1 = arith.constant 0 : index
    %c0_2 = arith.constant 0 : index
    %1 = vector.load %arg2[%c0_1, %c0_2] : memref<128x128xf32, #tpu.memory_space<vmem>>, vector<128x128xf32>
    %c0_3 = arith.constant 0 : index
    %c0_4 = arith.constant 0 : index
    %2 = vector.load %arg3[%c0_3, %c0_4] : memref<1x128xf32, #tpu.memory_space<vmem>>, vector<1x128xf32>
    %cst = arith.constant dense<0.000000e+00> : vector<256x128xf32>
    %3 = tpu.matmul %0, %1, %cst {dimension_numbers = #tpu.dot_dimension_numbers<[1], [0], [0], [1], [0, 0, 1, 1], [], []>} : vector<256x128xf32>, vector<128x128xf32>, vector<256x128xf32> -> vector<256x128xf32>
    %4 = vector.broadcast %2 : vector<1x128xf32> to vector<256x128xf32>
    %5 = arith.addf %3, %4 : vector<256x128xf32>
    %cst_5 = arith.constant 0.000000e+00 : f32
    %6 = vector.broadcast %cst_5 : f32 to vector<256x128xf32>
    %7 = arith.maximumf %5, %6 : vector<256x128xf32>
    %c0_6 = arith.constant 0 : index
    %c0_7 = arith.constant 0 : index
    %8 = vector.load %arg4[%c0_6, %c0_7] : memref<128x128xf32, #tpu.memory_space<vmem>>, vector<128x128xf32>
    %c0_8 = arith.constant 0 : index
    %c0_9 = arith.constant 0 : index
    %9 = vector.load %arg5[%c0_8, %c0_9] : memref<1x128xf32, #tpu.memory_space<vmem>>, vector<1x128xf32>
    %cst_10 = arith.constant dense<0.000000e+00> : vector<256x128xf32>
    %10 = tpu.matmul %7, %8, %cst_10 {dimension_numbers = #tpu.dot_dimension_numbers<[1], [0], [0], [1], [0, 0, 1, 1], [], []>} : vector<256x128xf32>, vector<128x128xf32>, vector<256x128xf32> -> vector<256x128xf32>
    %11 = vector.broadcast %9 : vector<1x128xf32> to vector<256x128xf32>
    %12 = arith.addf %10, %11 : vector<256x128xf32>
    %cst_11 = arith.constant 0.000000e+00 : f32
    %13 = vector.broadcast %cst_11 : f32 to vector<256x128xf32>
    %14 = arith.maximumf %12, %13 : vector<256x128xf32>
    %c0_12 = arith.constant 0 : index
    %c0_13 = arith.constant 0 : index
    %15 = vector.load %arg6[%c0_12, %c0_13] : memref<128x128xf32, #tpu.memory_space<vmem>>, vector<128x128xf32>
    %c0_14 = arith.constant 0 : index
    %c0_15 = arith.constant 0 : index
    %16 = vector.load %arg7[%c0_14, %c0_15] : memref<1x128xf32, #tpu.memory_space<vmem>>, vector<1x128xf32>
    %cst_16 = arith.constant dense<0.000000e+00> : vector<256x128xf32>
    %17 = tpu.matmul %14, %15, %cst_16 {dimension_numbers = #tpu.dot_dimension_numbers<[1], [0], [0], [1], [0, 0, 1, 1], [], []>} : vector<256x128xf32>, vector<128x128xf32>, vector<256x128xf32> -> vector<256x128xf32>
    %18 = vector.broadcast %16 : vector<1x128xf32> to vector<256x128xf32>
    %19 = arith.addf %17, %18 : vector<256x128xf32>
    %c0_17 = arith.constant 0 : index
    %c0_18 = arith.constant 0 : index
    %20 = vector.load %arg8[%c0_17, %c0_18] : memref<256x128xf32, #tpu.memory_space<vmem>>, vector<256x128xf32>
    tpu.vector_store %arg8[%c0_17, %c0_18], %19 {strides = array<i32>} : memref<256x128xf32, #tpu.memory_space<vmem>>, vector<256x128xf32>,
    return
  }
  func.func @transform_0(%arg0: i32) -> (i32, i32) {
    %c0_i32 = arith.constant 0 : i32
    %c0_i32_0 = arith.constant 0 : i32
    return %arg0, %c0_i32 : i32, i32
  }
  func.func @transform_1(%arg0: i32) -> (i32, i32) {
    %c0_i32 = arith.constant 0 : i32
    %c0_i32_0 = arith.constant 0 : i32
    %c0_i32_1 = arith.constant 0 : i32
    return %c0_i32, %c0_i32_0 : i32, i32
  }
  func.func @transform_2(%arg0: i32) -> (i32, i32) {
    %c0_i32 = arith.constant 0 : i32
    %c0_i32_0 = arith.constant 0 : i32
    %c0_i32_1 = arith.constant 0 : i32
    return %c0_i32, %c0_i32_0 : i32, i32
  }
  func.func @transform_3(%arg0: i32) -> (i32, i32) {
    %c0_i32 = arith.constant 0 : i32
    %c0_i32_0 = arith.constant 0 : i32
    %c0_i32_1 = arith.constant 0 : i32
    return %c0_i32, %c0_i32_0 : i32, i32
  }
  func.func @transform_4(%arg0: i32) -> (i32, i32) {
    %c0_i32 = arith.constant 0 : i32
    %c0_i32_0 = arith.constant 0 : i32
    %c0_i32_1 = arith.constant 0 : i32
    return %c0_i32, %c0_i32_0 : i32, i32
  }
  func.func @transform_5(%arg0: i32) -> (i32, i32) {
    %c0_i32 = arith.constant 0 : i32
    %c0_i32_0 = arith.constant 0 : i32
    %c0_i32_1 = arith.constant 0 : i32
    return %c0_i32, %c0_i32_0 : i32, i32
  }
  func.func @transform_6(%arg0: i32) -> (i32, i32) {
    %c0_i32 = arith.constant 0 : i32
    %c0_i32_0 = arith.constant 0 : i32
    %c0_i32_1 = arith.constant 0 : i32
    return %c0_i32, %c0_i32_0 : i32, i32
  }
  func.func @transform_7(%arg0: i32) -> (i32, i32) {
    %c0_i32 = arith.constant 0 : i32
    %c0_i32_0 = arith.constant 0 : i32
    return %arg0, %c0_i32 : i32, i32
  }
}

</mosaic_0001>

<llo_original>
// kernel: mlp_forward.1
$region0: #{mlp_forward.1}
  #allocation0 [shape = 'u32[]', space=smem, size = 0x4, offset = 0x4, fixed_abs, tag = 'smem constant byte address 0x4 - core index']
  #allocation1 [shape = 'u32[144,128]{1,0:T(1,128)}', space=vmem, size = 0x12000, scoped, tag = 'internal scratch']
  %s0 = inlined_call_operand.vmem [shape: f32[512,128], index: 0, kind: input, shape index: {}]
  %s1 = inlined_call_operand.vmem [shape: f32[128,128], index: 1, kind: input, shape index: {}]
  %s2 = inlined_call_operand.vmem [shape: f32[1,128], index: 2, kind: input, shape index: {}]
  %s3 = inlined_call_operand.vmem [shape: f32[128,128], index: 3, kind: input, shape index: {}]
  %s4 = inlined_call_operand.vmem [shape: f32[1,128], index: 4, kind: input, shape index: {}]
  %s5 = inlined_call_operand.vmem [shape: f32[128,128], index: 5, kind: input, shape index: {}]
  %s6 = inlined_call_operand.vmem [shape: f32[1,128], index: 6, kind: input, shape index: {}]
  %s7 = inlined_call_operand.vmem [shape: f32[512,128], index: 7, kind: output, shape index: {}]
  %s8 = sld [smem:[#allocation0]]
  $region61: #{mlp_forward.1} parent=0
    _
  %s10 = ssub.s32 1, %s8
  %s11 = scalar_select 0, %s10, %s8
  loop: start=0, step=1, limit=4
  $region2: #{mlp_forward.1} parent=0 // loop_pre_header
    _
  $region3: #{mlp_forward.1} parent=0 // loop_header
    %s13 = sphi 0, %s17
    %p14 = scmp.ge.s32.totalorder %s13, 4
    %s23 = sphi 0, %s25
    %s26 = sphi 0, %s23
    %s27 = sphi 0, %s26
    %s43 = sphi 0, %s27
    %s47 = sphi 0, %s47
    %s49 = sphi 0, %s47
    %s50 = sphi 0, %s49
    %s64 = sphi 0, %s50
    %s68 = sphi 0, %s68
    %s70 = sphi 0, %s68
    %s71 = sphi 0, %s70
    %s85 = sphi 0, %s71
    %s89 = sphi 0, %s89
    %s91 = sphi 0, %s89
    %s92 = sphi 0, %s91
    %s106 = sphi 0, %s92
    %s110 = sphi 0, %s110
    %s112 = sphi 0, %s110
    %s113 = sphi 0, %s112
    %s127 = sphi 0, %s113
    %s131 = sphi 0, %s131
    %s133 = sphi 0, %s131
    %s134 = sphi 0, %s133
    %s148 = sphi 0, %s134
    %s152 = sphi 0, %s152
    %s154 = sphi 0, %s152
    %s155 = sphi 0, %s154
    %s169 = sphi 0, %s155
    %s175 = sphi 0, %s177
    %s178 = sphi 0, %s175
    %s179 = sphi 0, %s178
    %s195 = sphi 0, %s179
  $region4: #{mlp_forward.1} parent=0 // loop_header_branch
    %16 = sbr.rel (%p14) target = $region8
  $region5: #{mlp_forward.1} parent=0 // loop_body
    %s18 = ssub.s32 %s13, 1
    %s19 = ssub.s32 %s13, 2
    %s20 = sadd.s32 %s13, 1
    %s21 = ssub.s32 %s13, %s20
    %p22 = scmp.eq.s32.totalorder %s21, 0
    %s24 = sadd.s32 %s23, 1
    %s25 = scalar_select %p22, %s23, %s24
    %p28 = pneg %p22
    %p29 = scmp.eq.s32.totalorder %s13, 1
    %p30 = por %p28, %p29
    %p31 = scmp.ne.s32.totalorder %s23, %s26
    %p32 = scmp.eq.s32.totalorder %s13, 0
    %p33 = por %p31, %p32
    %p34 = scmp.ne.s32.totalorder %s23, %s26
    %p35 = scmp.eq.s32.totalorder %s18, 1
    %p36 = por %p34, %p35
    %p37 = scmp.ne.s32.totalorder %s26, %s27
    %p38 = scmp.eq.s32.totalorder %s18, 0
    %p39 = por %p37, %p38
    %p40 = scmp.ne.s32.totalorder %s26, %s27
    %p41 = scmp.eq.s32.totalorder %s19, 1
    %p42 = por %p40, %p41
    %p44 = scmp.ne.s32.totalorder %s27, %s43
    %p45 = scmp.eq.s32.totalorder %s19, 0
    %p46 = por %p44, %p45
    %s48 = sadd.s32 %s47, 1
    %p51 = scmp.eq.s32.totalorder %s13, 1
    %p52 = scmp.ne.s32.totalorder %s47, %s49
    %p53 = scmp.eq.s32.totalorder %s13, 0
    %p54 = por %p52, %p53
    %p55 = scmp.ne.s32.totalorder %s47, %s49
    %p56 = scmp.eq.s32.totalorder %s18, 1
    %p57 = por %p55, %p56
    %p58 = scmp.ne.s32.totalorder %s49, %s50
    %p59 = scmp.eq.s32.totalorder %s18, 0
    %p60 = por %p58, %p59
    %p61 = scmp.ne.s32.totalorder %s49, %s50
    %p62 = scmp.eq.s32.totalorder %s19, 1
    %p63 = por %p61, %p62
    %p65 = scmp.ne.s32.totalorder %s50, %s64
    %p66 = scmp.eq.s32.totalorder %s19, 0
    %p67 = por %p65, %p66
    %s69 = sadd.s32 %s68, 1
    %p72 = scmp.eq.s32.totalorder %s13, 1
    %p73 = scmp.ne.s32.totalorder %s68, %s70
    %p74 = scmp.eq.s32.totalorder %s13, 0
    %p75 = por %p73, %p74
    %p76 = scmp.ne.s32.totalorder %s68, %s70
    %p77 = scmp.eq.s32.totalorder %s18, 1
    %p78 = por %p76, %p77
    %p79 = scmp.ne.s32.totalorder %s70, %s71
    %p80 = scmp.eq.s32.totalorder %s18, 0
    %p81 = por %p79, %p80
    %p82 = scmp.ne.s32.totalorder %s70, %s71
    %p83 = scmp.eq.s32.totalorder %s19, 1
    %p84 = por %p82, %p83
    %p86 = scmp.ne.s32.totalorder %s71, %s85
    %p87 = scmp.eq.s32.totalorder %s19, 0
    %p88 = por %p86, %p87
    %s90 = sadd.s32 %s89, 1
    %p93 = scmp.eq.s32.totalorder %s13, 1
    %p94 = scmp.ne.s32.totalorder %s89, %s91
    %p95 = scmp.eq.s32.totalorder %s13, 0
    %p96 = por %p94, %p95
    %p97 = scmp.ne.s32.totalorder %s89, %s91
    %p98 = scmp.eq.s32.totalorder %s18, 1
    %p99 = por %p97, %p98
    %p100 = scmp.ne.s32.totalorder %s91, %s92
    %p101 = scmp.eq.s32.totalorder %s18, 0
    %p102 = por %p100, %p101
    %p103 = scmp.ne.s32.totalorder %s91, %s92
    %p104 = scmp.eq.s32.totalorder %s19, 1
    %p105 = por %p103, %p104
    %p107 = scmp.ne.s32.totalorder %s92, %s106
    %p108 = scmp.eq.s32.totalorder %s19, 0
    %p109 = por %p107, %p108
    %s111 = sadd.s32 %s110, 1
    %p114 = scmp.eq.s32.totalorder %s13, 1
    %p115 = scmp.ne.s32.totalorder %s110, %s112
    %p116 = scmp.eq.s32.totalorder %s13, 0
    %p117 = por %p115, %p116
    %p118 = scmp.ne.s32.totalorder %s110, %s112
    %p119 = scmp.eq.s32.totalorder %s18, 1
    %p120 = por %p118, %p119
    %p121 = scmp.ne.s32.totalorder %s112, %s113
    %p122 = scmp.eq.s32.totalorder %s18, 0
    %p123 = por %p121, %p122
    %p124 = scmp.ne.s32.totalorder %s112, %s113
    %p125 = scmp.eq.s32.totalorder %s19, 1
    %p126 = por %p124, %p125
    %p128 = scmp.ne.s32.totalorder %s113, %s127
    %p129 = scmp.eq.s32.totalorder %s19, 0
    %p130 = por %p128, %p129
    %s132 = sadd.s32 %s131, 1
    %p135 = scmp.eq.s32.totalorder %s13, 1
    %p136 = scmp.ne.s32.totalorder %s131, %s133
    %p137 = scmp.eq.s32.totalorder %s13, 0
    %p138 = por %p136, %p137
    %p139 = scmp.ne.s32.totalorder %s131, %s133
    %p140 = scmp.eq.s32.totalorder %s18, 1
    %p141 = por %p139, %p140
    %p142 = scmp.ne.s32.totalorder %s133, %s134
    %p143 = scmp.eq.s32.totalorder %s18, 0
    %p144 = por %p142, %p143
    %p145 = scmp.ne.s32.totalorder %s133, %s134
    %p146 = scmp.eq.s32.totalorder %s19, 1
    %p147 = por %p145, %p146
    %p149 = scmp.ne.s32.totalorder %s134, %s148
    %p150 = scmp.eq.s32.totalorder %s19, 0
    %p151 = por %p149, %p150
    %s153 = sadd.s32 %s152, 1
    %p156 = scmp.eq.s32.totalorder %s13, 1
    %p157 = scmp.ne.s32.totalorder %s152, %s154
    %p158 = scmp.eq.s32.totalorder %s13, 0
    %p159 = por %p157, %p158
    %p160 = scmp.ne.s32.totalorder %s152, %s154
    %p161 = scmp.eq.s32.totalorder %s18, 1
    %p162 = por %p160, %p161
    %p163 = scmp.ne.s32.totalorder %s154, %s155
    %p164 = scmp.eq.s32.totalorder %s18, 0
    %p165 = por %p163, %p164
    %p166 = scmp.ne.s32.totalorder %s154, %s155
    %p167 = scmp.eq.s32.totalorder %s19, 1
    %p168 = por %p166, %p167
    %p170 = scmp.ne.s32.totalorder %s155, %s169
    %p171 = scmp.eq.s32.totalorder %s19, 0
    %p172 = por %p170, %p171
    %s173 = ssub.s32 %s13, %s20
    %p174 = scmp.eq.s32.totalorder %s173, 0
    %s176 = sadd.s32 %s175, 1
    %s177 = scalar_select %p174, %s175, %s176
    %p180 = pneg %p174
    %p181 = scmp.eq.s32.totalorder %s13, 1
    %p182 = por %p180, %p181
    %p183 = scmp.ne.s32.totalorder %s175, %s178
    %p184 = scmp.eq.s32.totalorder %s13, 0
    %p185 = por %p183, %p184
    %p186 = scmp.ne.s32.totalorder %s175, %s178
    %p187 = scmp.eq.s32.totalorder %s18, 1
    %p188 = por %p186, %p187
    %p189 = scmp.ne.s32.totalorder %s178, %s179
    %p190 = scmp.eq.s32.totalorder %s18, 0
    %p191 = por %p189, %p190
    %p192 = scmp.ne.s32.totalorder %s178, %s179
    %p193 = scmp.eq.s32.totalorder %s19, 1
    %p194 = por %p192, %p193
    %p196 = scmp.ne.s32.totalorder %s179, %s195
    %p197 = scmp.eq.s32.totalorder %s19, 0
    %p198 = por %p196, %p197
    %p199 = scmp.le.s32.totalorder 1, %s13
    %p200 = scmp.lt.s32.totalorder %s13, 3
    %p201 = pnand %p199, %p200
    %p202 = pneg %p201
    // Predicated region
    $region9: #{mlp_forward.1} parent=5 // pred_check
      _
    $region10: #{mlp_forward.1} parent=5 // pred_check_branch
      %204 = sbr.rel (%p201) target = $region12
    $region11: #{mlp_forward.1} parent=5 // pred_region
      %s205 = ssub.s32 %s13, 1
      // Predicated region
      $region13: #{mlp_forward.1} parent=11 // pred_check
        %p206 = pneg %p60
      $region14: #{mlp_forward.1} parent=11 // pred_check_branch
        %208 = sbr.rel (%p206) target = $region16
      $region15: #{mlp_forward.1} parent=11 // pred_region
        _
      $region16: #{mlp_forward.1} parent=11 // pred_fallthru
        _
      // Predicated region
      $region17: #{mlp_forward.1} parent=11 // pred_check
        %p209 = pneg %p81
      $region18: #{mlp_forward.1} parent=11 // pred_check_branch
        %211 = sbr.rel (%p209) target = $region20
      $region19: #{mlp_forward.1} parent=11 // pred_region
        _
      $region20: #{mlp_forward.1} parent=11 // pred_fallthru
        _
      // Predicated region
      $region21: #{mlp_forward.1} parent=11 // pred_check
        %p212 = pneg %p102
      $region22: #{mlp_forward.1} parent=11 // pred_check_branch
        %214 = sbr.rel (%p212) target = $region24
      $region23: #{mlp_forward.1} parent=11 // pred_region
        _
      $region24: #{mlp_forward.1} parent=11 // pred_fallthru
        _
      // Predicated region
      $region25: #{mlp_forward.1} parent=11 // pred_check
        %p215 = pneg %p123
      $region26: #{mlp_forward.1} parent=11 // pred_check_branch
        %217 = sbr.rel (%p215) target = $region28
      $region27: #{mlp_forward.1} parent=11 // pred_region
        _
      $region28: #{mlp_forward.1} parent=11 // pred_fallthru
        _
      // Predicated region
      $region29: #{mlp_forward.1} parent=11 // pred_check
        %p218 = pneg %p144
      $region30: #{mlp_forward.1} parent=11 // pred_check_branch
        %220 = sbr.rel (%p218) target = $region32
      $region31: #{mlp_forward.1} parent=11 // pred_region
        _
      $region32: #{mlp_forward.1} parent=11 // pred_fallthru
        _
      // Predicated region
      $region33: #{mlp_forward.1} parent=11 // pred_check
        %p221 = pneg %p165
      $region34: #{mlp_forward.1} parent=11 // pred_check_branch
        %223 = sbr.rel (%p221) target = $region36
      $region35: #{mlp_forward.1} parent=11 // pred_region
        _
      $region36: #{mlp_forward.1} parent=11 // pred_fallthru
        _
    $region12: #{mlp_forward.1} parent=5 // pred_fallthru
      _
    %p224 = scmp.lt.s32.totalorder %s13, 2
    // Predicated region
    $region37: #{mlp_forward.1} parent=5 // pred_check
      %p225 = pneg %p224
    $region38: #{mlp_forward.1} parent=5 // pred_check_branch
      %227 = sbr.rel (%p225) target = $region40
    $region39: #{mlp_forward.1} parent=5 // pred_region
      // Predicated region
      $region41: #{mlp_forward.1} parent=39 // pred_check
        %p228 = pneg %p33
      $region42: #{mlp_forward.1} parent=39 // pred_check_branch
        %230 = sbr.rel (%p228) target = $region44
      $region43: #{mlp_forward.1} parent=39 // pred_region
        %s231 = smul.u32 32, %s13
        %p232 = scmp.lt.s32.totalorder %s231, 63
        %s233 = scalar_select %p232, %s231, 63
        %s234 = smul.addr %s233, 8
        %s235 = scalar_lea.vmem %s0, %s234
        %s236 = smul.u32 32, %s13
      $region44: #{mlp_forward.1} parent=39 // pred_fallthru
        _
    $region40: #{mlp_forward.1} parent=5 // pred_fallthru
      _
    %p237 = scmp.le.s32.totalorder 1, %s13
    %p238 = scmp.lt.s32.totalorder %s13, 3
    %p239 = pnand %p237, %p238
    %p240 = pneg %p239
    // Predicated region
    $region45: #{mlp_forward.1} parent=5 // pred_check
      _
    $region46: #{mlp_forward.1} parent=5 // pred_check_branch
      %242 = sbr.rel (%p239) target = $region48
    $region47: #{mlp_forward.1} parent=5 // pred_region
      %s243 = ssub.s32 %s13, 1
      %s244 = smul.u32 32, %s18
      %p245 = scmp.lt.s32.totalorder %s244, 63
      %s246 = scalar_select %p245, %s244, 63
      %s247 = smul.addr %s246, 8
      %s248 = scalar_lea.vmem %s0, %s247
      %p249 = pneg %p39
      %p250 = pneg %p36
      %p251 = pneg %p60
      %p252 = pneg %p57
      %p253 = pneg %p81
      %p254 = pneg %p78
      %p255 = pneg %p102
      %p256 = pneg %p99
      %p257 = pneg %p123
      %p258 = pneg %p120
      %p259 = pneg %p144
      %p260 = pneg %p141
      %p261 = pneg %p165
      %p262 = pneg %p162
      %p263 = pneg %p191
      %p264 = pneg %p188
      %s265 = smul.u32 32, %s18
      %p266 = scmp.lt.s32.totalorder %s265, 63
      %s267 = scalar_select %p266, %s265, 63
      %s268 = smul.addr %s267, 8
      %s269 = scalar_lea.vmem %s7, %s268
      %s270 = smul.u32 32, %s18
      %p271 = scmp.lt.s32.totalorder %s270, 63
      %s272 = scalar_select %p271, %s270, 63
      %s273 = smul.addr %s272, 8
      %s274 = scalar_lea.vmem %s0, %s273
      %s275 = smul.u32 32, %s18
      %s276 = smul.u32 32, %s18
      %p277 = scmp.lt.s32.totalorder %s276, 63
      %s278 = scalar_select %p277, %s276, 63
      %s279 = smul.addr %s278, 8
      %s280 = scalar_lea.vmem %s7, %s279
      %s281 = smul.u32 32, %s18
      %v282 = vld [vmem:[%s274] sm:$0xff]
      %v283 = vld [vmem:[%s274 + $0x8] sm:$0xff]
      %v284 = vld [vmem:[%s274 + $0x10] sm:$0xff]
      %v285 = vld [vmem:[%s274 + $0x18] sm:$0xff]
      %v286 = vld [vmem:[%s274 + $0x20] sm:$0xff]
      %v287 = vld [vmem:[%s274 + $0x28] sm:$0xff]
      %v288 = vld [vmem:[%s274 + $0x30] sm:$0xff]
      %v289 = vld [vmem:[%s274 + $0x38] sm:$0xff]
      %v290 = vld [vmem:[%s274 + $0x40] sm:$0xff]
      %v291 = vld [vmem:[%s274 + $0x48] sm:$0xff]
      %v292 = vld [vmem:[%s274 + $0x50] sm:$0xff]
      %v293 = vld [vmem:[%s274 + $0x58] sm:$0xff]
      %v294 = vld [vmem:[%s274 + $0x60] sm:$0xff]
      %v295 = vld [vmem:[%s274 + $0x68] sm:$0xff]
      %v296 = vld [vmem:[%s274 + $0x70] sm:$0xff]
      %v297 = vld [vmem:[%s274 + $0x78] sm:$0xff]
      %v298 = vld [vmem:[%s274 + $0x80] sm:$0xff]
      %v299 = vld [vmem:[%s274 + $0x88] sm:$0xff]
      %v300 = vld [vmem:[%s274 + $0x90] sm:$0xff]
      %v301 = vld [vmem:[%s274 + $0x98] sm:$0xff]
      %v302 = vld [vmem:[%s274 + $0xa0] sm:$0xff]
      %v303 = vld [vmem:[%s274 + $0xa8] sm:$0xff]
      %v304 = vld [vmem:[%s274 + $0xb0] sm:$0xff]
      %v305 = vld [vmem:[%s274 + $0xb8] sm:$0xff]
      %v306 = vld [vmem:[%s274 + $0xc0] sm:$0xff]
      %v307 = vld [vmem:[%s274 + $0xc8] sm:$0xff]
      %v308 = vld [vmem:[%s274 + $0xd0] sm:$0xff]
      %v309 = vld [vmem:[%s274 + $0xd8] sm:$0xff]
      %v310 = vld [vmem:[%s274 + $0xe0] sm:$0xff]
      %v311 = vld [vmem:[%s274 + $0xe8] sm:$0xff]
      %v312 = vld [vmem:[%s274 + $0xf0] sm:$0xff]
      %v313 = vld [vmem:[%s274 + $0xf8] sm:$0xff]
      %v314 = vld [vmem:[%s1] sm:$0xff]
      %v315 = vld [vmem:[%s1 + $0x8] sm:$0xff]
      %v316 = vld [vmem:[%s1 + $0x10] sm:$0xff]
      %v317 = vld [vmem:[%s1 + $0x18] sm:$0xff]
      %v318 = vld [vmem:[%s1 + $0x20] sm:$0xff]
      %v319 = vld [vmem:[%s1 + $0x28] sm:$0xff]
      %v320 = vld [vmem:[%s1 + $0x30] sm:$0xff]
      %v321 = vld [vmem:[%s1 + $0x38] sm:$0xff]
      %v322 = vld [vmem:[%s1 + $0x40] sm:$0xff]
      %v323 = vld [vmem:[%s1 + $0x48] sm:$0xff]
      %v324 = vld [vmem:[%s1 + $0x50] sm:$0xff]
      %v325 = vld [vmem:[%s1 + $0x58] sm:$0xff]
      %v326 = vld [vmem:[%s1 + $0x60] sm:$0xff]
      %v327 = vld [vmem:[%s1 + $0x68] sm:$0xff]
      %v328 = vld [vmem:[%s1 + $0x70] sm:$0xff]
      %v329 = vld [vmem:[%s1 + $0x78] sm:$0xff]
      %v330 = vld [vmem:[%s2] sm:$0x1]
      %v332 = vlaneseq
      %v333 = vshrl.u32 %v332, 7
      %v334 = vsub.s32 0, %v333
      %v335 = vrot.slane %v330, %v334
      %337 = vmatprep.subr.mxu0 0.0
      %338 = vmatpush1.msra.mxu0 %v314
      %339 = vmatprep.subr.mxu0 0.0
      %340 = vmatpush1.msra.mxu0 %v315
      %341 = vmatprep.subr.mxu0 0.0
      %342 = vmatpush1.msra.mxu0 %v316
      %343 = vmatprep.subr.mxu0 0.0
      %344 = vmatpush1.msra.mxu0 %v317
      %345 = vmatprep.subr.mxu0 0.0
      %346 = vmatpush1.msra.mxu0 %v318
      %347 = vmatprep.subr.mxu0 0.0
      %348 = vmatpush1.msra.mxu0 %v319
      %349 = vmatprep.subr.mxu0 0.0
      %350 = vmatpush1.msra.mxu0 %v320
      %351 = vmatprep.subr.mxu0 0.0
      %352 = vmatpush1.msra.mxu0 %v321
      %353 = vmatprep.subr.mxu0 0.0
      %354 = vmatpush1.msra.mxu0 %v322
      %355 = vmatprep.subr.mxu0 0.0
      %356 = vmatpush1.msra.mxu0 %v323
      %357 = vmatprep.subr.mxu0 0.0
      %358 = vmatpush1.msra.mxu0 %v324
      %359 = vmatprep.subr.mxu0 0.0
      %360 = vmatpush1.msra.mxu0 %v325
      %361 = vmatprep.subr.mxu0 0.0
      %362 = vmatpush1.msra.mxu0 %v326
      %363 = vmatprep.subr.mxu0 0.0
      %364 = vmatpush1.msra.mxu0 %v327
      %365 = vmatprep.subr.mxu0 0.0
      %366 = vmatpush1.msra.mxu0 %v328
      %367 = vmatprep.subr.mxu0 0.0
      %368 = vmatpush1.msra.mxu0 %v329
      %369 = vmatprep.subr.mxu0 0.0
      %370 = vmatpush1.msra.mxu0 0.0
      %371 = vmatprep.subr.mxu0 0.0
      %372 = vmatpush1.msra.mxu0 0.0
      %373 = vmatprep.subr.mxu0 0.0
      %374 = vmatpush1.msra.mxu0 0.0
      %375 = vmatprep.subr.mxu0 0.0
      %376 = vmatpush1.msra.mxu0 0.0
      %377 = vmatprep.subr.mxu0 0.0
      %378 = vmatpush1.msra.mxu0 0.0
      %379 = vmatprep.subr.mxu0 0.0
      %380 = vmatpush1.msra.mxu0 0.0
      %381 = vmatprep.subr.mxu0 0.0
      %382 = vmatpush1.msra.mxu0 0.0
      %383 = vmatprep.subr.mxu0 0.0
      %384 = vmatpush1.msra.mxu0 0.0
      %385 = vmatprep.subr.mxu0 0.0
      %386 = vmatpush1.msra.mxu0 0.0
      %387 = vmatprep.subr.mxu0 0.0
      %388 = vmatpush1.msra.mxu0 0.0
      %389 = vmatprep.subr.mxu0 0.0
      %390 = vmatpush1.msra.mxu0 0.0
      %391 = vmatprep.subr.mxu0 0.0
      %392 = vmatpush1.msra.mxu0 0.0
      %393 = vmatprep.subr.mxu0 0.0
      %394 = vmatpush1.msra.mxu0 0.0
      %395 = vmatprep.subr.mxu0 0.0
      %396 = vmatpush1.msra.mxu0 0.0
      %397 = vmatprep.subr.mxu0 0.0
      %398 = vmatpush1.msra.mxu0 0.0
      %399 = vmatprep.subr.mxu0 0.0
      %400 = vmatpush1.msra.mxu0 0.0
      %401 = vmatprep.mubr.f32.mxu0 0.0
      %402 = vmatmul.mubr.f32.gmra.mrb[0].mxu0 %v282
      %v403 = vpop.f32.mrb[0].mxu0
      %v404 = vadd.f32 %v335, %v403
      %v405 = vpop.f32.mrb[0].mxu0
      %406 = vmatprep.mubr.f32.mxu0 0.0
      %407 = vmatmul.mubr.f32.gmra.mrb[0].mxu0 %v283
      %v408 = vpop.f32.mrb[0].mxu0
      %v409 = vadd.f32 %v335, %v408
      %v410 = vpop.f32.mrb[0].mxu0
      %411 = vmatprep.mubr.f32.mxu0 0.0
      %412 = vmatmul.mubr.f32.gmra.mrb[0].mxu0 %v284
      %v413 = vpop.f32.mrb[0].mxu0
      %v414 = vadd.f32 %v335, %v413
      %v415 = vpop.f32.mrb[0].mxu0
      %416 = vmatprep.mubr.f32.mxu0 0.0
      %417 = vmatmul.mubr.f32.gmra.mrb[0].mxu0 %v285
      %v418 = vpop.f32.mrb[0].mxu0
      %v419 = vadd.f32 %v335, %v418
      %v420 = vpop.f32.mrb[0].mxu0
      %421 = vmatprep.mubr.f32.mxu0 0.0
      %422 = vmatmul.mubr.f32.gmra.mrb[0].mxu0 %v286
      %v423 = vpop.f32.mrb[0].mxu0
      %v424 = vadd.f32 %v335, %v423
      %v425 = vpop.f32.mrb[0].mxu0
      %426 = vmatprep.mubr.f32.mxu0 0.0
      %427 = vmatmul.mubr.f32.gmra.mrb[0].mxu0 %v287
      %v428 = vpop.f32.mrb[0].mxu0
      %v429 = vadd.f32 %v335, %v428
      %v430 = vpop.f32.mrb[0].mxu0
      %431 = vmatprep.mubr.f32.mxu0 0.0
      %432 = vmatmul.mubr.f32.gmra.mrb[0].mxu0 %v288
      %v433 = vpop.f32.mrb[0].mxu0
      %v434 = vadd.f32 %v335, %v433
      %v435 = vpop.f32.mrb[0].mxu0
      %436 = vmatprep.mubr.f32.mxu0 0.0
      %437 = vmatmul.mubr.f32.gmra.mrb[0].mxu0 %v289
      %v438 = vpop.f32.mrb[0].mxu0
      %v439 = vadd.f32 %v335, %v438
      %v440 = vpop.f32.mrb[0].mxu0
      %441 = vmatprep.mubr.f32.mxu0 0.0
      %442 = vmatmul.mubr.f32.gmra.mrb[0].mxu0 %v290
      %v443 = vpop.f32.mrb[0].mxu0
      %v444 = vadd.f32 %v335, %v443
      %v445 = vpop.f32.mrb[0].mxu0
      %446 = vmatprep.mubr.f32.mxu0 0.0
      %447 = vmatmul.mubr.f32.gmra.mrb[0].mxu0 %v291
      %v448 = vpop.f32.mrb[0].mxu0
      %v449 = vadd.f32 %v335, %v448
      %v450 = vpop.f32.mrb[0].mxu0
      %451 = vmatprep.mubr.f32.mxu0 0.0
      %452 = vmatmul.mubr.f32.gmra.mrb[0].mxu0 %v292
      %v453 = vpop.f32.mrb[0].mxu0
      %v454 = vadd.f32 %v335, %v453
      %v455 = vpop.f32.mrb[0].mxu0
      %456 = vmatprep.mubr.f32.mxu0 0.0
      %457 = vmatmul.mubr.f32.gmra.mrb[0].mxu0 %v293
      %v458 = vpop.f32.mrb[0].mxu0
      %v459 = vadd.f32 %v335, %v458
      %v460 = vpop.f32.mrb[0].mxu0
      %461 = vmatprep.mubr.f32.mxu0 0.0
      %462 = vmatmul.mubr.f32.gmra.mrb[0].mxu0 %v294
      %v463 = vpop.f32.mrb[0].mxu0
      %v464 = vadd.f32 %v335, %v463
      %v465 = vpop.f32.mrb[0].mxu0
      %466 = vmatprep.mubr.f32.mxu0 0.0
      %467 = vmatmul.mubr.f32.gmra.mrb[0].mxu0 %v295
      %v468 = vpop.f32.mrb[0].mxu0
      %v469 = vadd.f32 %v335, %v468
      %v470 = vpop.f32.mrb[0].mxu0
      %471 = vmatprep.mubr.f32.mxu0 0.0
      %472 = vmatmul.mubr.f32.gmra.mrb[0].mxu0 %v296
      %v473 = vpop.f32.mrb[0].mxu0
      %v474 = vadd.f32 %v335, %v473
      %v475 = vpop.f32.mrb[0].mxu0
      %476 = vmatprep.mubr.f32.mxu0 0.0
      %477 = vmatmul.mubr.f32.gmra.mrb[0].mxu0 %v297
      %v478 = vpop.f32.mrb[0].mxu0
      %v479 = vadd.f32 %v335, %v478
      %v480 = vpop.f32.mrb[0].mxu0
      %481 = vmatprep.mubr.f32.mxu0 0.0
      %482 = vmatmul.mubr.f32.gmra.mrb[0].mxu0 %v298
      %v483 = vpop.f32.mrb[0].mxu0
      %v484 = vadd.f32 %v335, %v483
      %v485 = vpop.f32.mrb[0].mxu0
      %486 = vmatprep.mubr.f32.mxu0 0.0
      %487 = vmatmul.mubr.f32.gmra.mrb[0].mxu0 %v299
      %v488 = vpop.f32.mrb[0].mxu0
      %v489 = vadd.f32 %v335, %v488
      %v490 = vpop.f32.mrb[0].mxu0
      %491 = vmatprep.mubr.f32.mxu0 0.0
      %492 = vmatmul.mubr.f32.gmra.mrb[0].mxu0 %v300
      %v493 = vpop.f32.mrb[0].mxu0
      %v494 = vadd.f32 %v335, %v493
      %v495 = vpop.f32.mrb[0].mxu0
      %496 = vmatprep.mubr.f32.mxu0 0.0
      %497 = vmatmul.mubr.f32.gmra.mrb[0].mxu0 %v301
      %v498 = vpop.f32.mrb[0].mxu0
      %v499 = vadd.f32 %v335, %v498
      %v500 = vpop.f32.mrb[0].mxu0
      %501 = vmatprep.mubr.f32.mxu0 0.0
      %502 = vmatmul.mubr.f32.gmra.mrb[0].mxu0 %v302
      %v503 = vpop.f32.mrb[0].mxu0
      %v504 = vadd.f32 %v335, %v503
      %v505 = vpop.f32.mrb[0].mxu0
      %506 = vmatprep.mubr.f32.mxu0 0.0
      %507 = vmatmul.mubr.f32.gmra.mrb[0].mxu0 %v303
      %v508 = vpop.f32.mrb[0].mxu0
      %v509 = vadd.f32 %v335, %v508
      %v510 = vpop.f32.mrb[0].mxu0
      %511 = vmatprep.mubr.f32.mxu0 0.0
      %512 = vmatmul.mubr.f32.gmra.mrb[0].mxu0 %v304
      %v513 = vpop.f32.mrb[0].mxu0
      %v514 = vadd.f32 %v335, %v513
      %v515 = vpop.f32.mrb[0].mxu0
      %516 = vmatprep.mubr.f32.mxu0 0.0
      %517 = vmatmul.mubr.f32.gmra.mrb[0].mxu0 %v305
      %v518 = vpop.f32.mrb[0].mxu0
      %v519 = vadd.f32 %v335, %v518
      %v520 = vpop.f32.mrb[0].mxu0
      %521 = vmatprep.mubr.f32.mxu0 0.0
      %522 = vmatmul.mubr.f32.gmra.mrb[0].mxu0 %v306
      %v523 = vpop.f32.mrb[0].mxu0
      %v524 = vadd.f32 %v335, %v523
      %v525 = vpop.f32.mrb[0].mxu0
      %526 = vmatprep.mubr.f32.mxu0 0.0
      %527 = vmatmul.mubr.f32.gmra.mrb[0].mxu0 %v307
      %v528 = vpop.f32.mrb[0].mxu0
      %v529 = vadd.f32 %v335, %v528
      %v530 = vpop.f32.mrb[0].mxu0
      %531 = vmatprep.mubr.f32.mxu0 0.0
      %532 = vmatmul.mubr.f32.gmra.mrb[0].mxu0 %v308
      %v533 = vpop.f32.mrb[0].mxu0
      %v534 = vadd.f32 %v335, %v533
      %v535 = vpop.f32.mrb[0].mxu0
      %536 = vmatprep.mubr.f32.mxu0 0.0
      %537 = vmatmul.mubr.f32.gmra.mrb[0].mxu0 %v309
      %v538 = vpop.f32.mrb[0].mxu0
      %v539 = vadd.f32 %v335, %v538
      %v540 = vpop.f32.mrb[0].mxu0
      %541 = vmatprep.mubr.f32.mxu0 0.0
      %542 = vmatmul.mubr.f32.gmra.mrb[0].mxu0 %v310
      %v543 = vpop.f32.mrb[0].mxu0
      %v544 = vadd.f32 %v335, %v543
      %v545 = vpop.f32.mrb[0].mxu0
      %546 = vmatprep.mubr.f32.mxu0 0.0
      %547 = vmatmul.mubr.f32.gmra.mrb[0].mxu0 %v311
      %v548 = vpop.f32.mrb[0].mxu0
      %v549 = vadd.f32 %v335, %v548
      %v550 = vpop.f32.mrb[0].mxu0
      %551 = vmatprep.mubr.f32.mxu0 0.0
      %552 = vmatmul.mubr.f32.gmra.mrb[0].mxu0 %v312
      %v553 = vpop.f32.mrb[0].mxu0
      %v554 = vadd.f32 %v335, %v553
      %v555 = vpop.f32.mrb[0].mxu0
      %556 = vmatprep.mubr.f32.mxu0 0.0
      %557 = vmatmul.mubr.f32.gmra.mrb[0].mxu0 %v313
      %v558 = vpop.f32.mrb[0].mxu0
      %v559 = vadd.f32 %v335, %v558
      %v560 = vpop.f32.mrb[0].mxu0
      %561 = vdwg.mxu0
      %v562 = vmax.f32 %v404, 0.0
      %v563 = vmax.f32 %v409, 0.0
      %v564 = vmax.f32 %v414, 0.0
      %v565 = vmax.f32 %v419, 0.0
      %v566 = vmax.f32 %v424, 0.0
      %v567 = vmax.f32 %v429, 0.0
      %v568 = vmax.f32 %v434, 0.0
      %v569 = vmax.f32 %v439, 0.0
      %v570 = vmax.f32 %v444, 0.0
      %v571 = vmax.f32 %v449, 0.0
      %v572 = vmax.f32 %v454, 0.0
      %v573 = vmax.f32 %v459, 0.0
      %v574 = vmax.f32 %v464, 0.0
      %v575 = vmax.f32 %v469, 0.0
      %v576 = vmax.f32 %v474, 0.0
      %v577 = vmax.f32 %v479, 0.0
      %v578 = vmax.f32 %v484, 0.0
      %v579 = vmax.f32 %v489, 0.0
      %v580 = vmax.f32 %v494, 0.0
      %v581 = vmax.f32 %v499, 0.0
      %v582 = vmax.f32 %v504, 0.0
      %v583 = vmax.f32 %v509, 0.0
      %v584 = vmax.f32 %v514, 0.0
      %v585 = vmax.f32 %v519, 0.0
      %v586 = vmax.f32 %v524, 0.0
      %v587 = vmax.f32 %v529, 0.0
      %v588 = vmax.f32 %v534, 0.0
      %v589 = vmax.f32 %v539, 0.0
      %v590 = vmax.f32 %v544, 0.0
      %v591 = vmax.f32 %v549, 0.0
      %v592 = vmax.f32 %v554, 0.0
      %v593 = vmax.f32 %v559, 0.0
      %v594 = vld [vmem:[%s3] sm:$0xff]
      %v595 = vld [vmem:[%s3 + $0x8] sm:$0xff]
      %v596 = vld [vmem:[%s3 + $0x10] sm:$0xff]
      %v597 = vld [vmem:[%s3 + $0x18] sm:$0xff]
      %v598 = vld [vmem:[%s3 + $0x20] sm:$0xff]
      %v599 = vld [vmem:[%s3 + $0x28] sm:$0xff]
      %v600 = vld [vmem:[%s3 + $0x30] sm:$0xff]
      %v601 = vld [vmem:[%s3 + $0x38] sm:$0xff]
      %v602 = vld [vmem:[%s3 + $0x40] sm:$0xff]
      %v603 = vld [vmem:[%s3 + $0x48] sm:$0xff]
      %v604 = vld [vmem:[%s3 + $0x50] sm:$0xff]
      %v605 = vld [vmem:[%s3 + $0x58] sm:$0xff]
      %v606 = vld [vmem:[%s3 + $0x60] sm:$0xff]
      %v607 = vld [vmem:[%s3 + $0x68] sm:$0xff]
      %v608 = vld [vmem:[%s3 + $0x70] sm:$0xff]
      %v609 = vld [vmem:[%s3 + $0x78] sm:$0xff]
      %v610 = vld [vmem:[%s4] sm:$0x1]
      %v612 = vlaneseq
      %v613 = vshrl.u32 %v612, 7
      %v614 = vsub.s32 0, %v613
      %v615 = vrot.slane %v610, %v614
      %617 = vmatprep.subr.mxu0 0.0
      %618 = vmatpush1.msra.mxu0 %v594
      %619 = vmatprep.subr.mxu0 0.0
      %620 = vmatpush1.msra.mxu0 %v595
      %621 = vmatprep.subr.mxu0 0.0
      %622 = vmatpush1.msra.mxu0 %v596
      %623 = vmatprep.subr.mxu0 0.0
      %624 = vmatpush1.msra.mxu0 %v597
      %625 = vmatprep.subr.mxu0 0.0
      %626 = vmatpush1.msra.mxu0 %v598
      %627 = vmatprep.subr.mxu0 0.0
      %628 = vmatpush1.msra.mxu0 %v599
      %629 = vmatprep.subr.mxu0 0.0
      %630 = vmatpush1.msra.mxu0 %v600
      %631 = vmatprep.subr.mxu0 0.0
      %632 = vmatpush1.msra.mxu0 %v601
      %633 = vmatprep.subr.mxu0 0.0
      %634 = vmatpush1.msra.mxu0 %v602
      %635 = vmatprep.subr.mxu0 0.0
      %636 = vmatpush1.msra.mxu0 %v603
      %637 = vmatprep.subr.mxu0 0.0
      %638 = vmatpush1.msra.mxu0 %v604
      %639 = vmatprep.subr.mxu0 0.0
      %640 = vmatpush1.msra.mxu0 %v605
      %641 = vmatprep.subr.mxu0 0.0
      %642 = vmatpush1.msra.mxu0 %v606
      %643 = vmatprep.subr.mxu0 0.0
      %644 = vmatpush1.msra.mxu0 %v607
      %645 = vmatprep.subr.mxu0 0.0
      %646 = vmatpush1.msra.mxu0 %v608
      %647 = vmatprep.subr.mxu0 0.0
      %648 = vmatpush1.msra.mxu0 %v609
      %649 = vmatprep.subr.mxu0 0.0
      %650 = vmatpush1.msra.mxu0 0.0
      %651 = vmatprep.subr.mxu0 0.0
      %652 = vmatpush1.msra.mxu0 0.0
      %653 = vmatprep.subr.mxu0 0.0
      %654 = vmatpush1.msra.mxu0 0.0
      %655 = vmatprep.subr.mxu0 0.0
      %656 = vmatpush1.msra.mxu0 0.0
      %657 = vmatprep.subr.mxu0 0.0
      %658 = vmatpush1.msra.mxu0 0.0
      %659 = vmatprep.subr.mxu0 0.0
      %660 = vmatpush1.msra.mxu0 0.0
      %661 = vmatprep.subr.mxu0 0.0
      %662 = vmatpush1.msra.mxu0 0.0
      %663 = vmatprep.subr.mxu0 0.0
      %664 = vmatpush1.msra.mxu0 0.0
      %665 = vmatprep.subr.mxu0 0.0
      %666 = vmatpush1.msra.mxu0 0.0
      %667 = vmatprep.subr.mxu0 0.0
      %668 = vmatpush1.msra.mxu0 0.0
      %669 = vmatprep.subr.mxu0 0.0
      %670 = vmatpush1.msra.mxu0 0.0
      %671 = vmatprep.subr.mxu0 0.0
      %672 = vmatpush1.msra.mxu0 0.0
      %673 = vmatprep.subr.mxu0 0.0
      %674 = vmatpush1.msra.mxu0 0.0
      %675 = vmatprep.subr.mxu0 0.0
      %676 = vmatpush1.msra.mxu0 0.0
      %677 = vmatprep.subr.mxu0 0.0
      %678 = vmatpush1.msra.mxu0 0.0
      %679 = vmatprep.subr.mxu0 0.0
      %680 = vmatpush1.msra.mxu0 0.0
      %681 = vmatprep.mubr.f32.mxu0 0.0
      %682 = vmatmul.mubr.f32.gmra.mrb[0].mxu0 %v562
      %v683 = vpop.f32.mrb[0].mxu0
      %v684 = vadd.f32 %v615, %v683
      %v685 = vpop.f32.mrb[0].mxu0
      %686 = vmatprep.mubr.f32.mxu0 0.0
      %687 = vmatmul.mubr.f32.gmra.mrb[0].mxu0 %v563
      %v688 = vpop.f32.mrb[0].mxu0
      %v689 = vadd.f32 %v615, %v688
      %v690 = vpop.f32.mrb[0].mxu0
      %691 = vmatprep.mubr.f32.mxu0 0.0
      %692 = vmatmul.mubr.f32.gmra.mrb[0].mxu0 %v564
      %v693 = vpop.f32.mrb[0].mxu0
      %v694 = vadd.f32 %v615, %v693
      %v695 = vpop.f32.mrb[0].mxu0
      %696 = vmatprep.mubr.f32.mxu0 0.0
      %697 = vmatmul.mubr.f32.gmra.mrb[0].mxu0 %v565
      %v698 = vpop.f32.mrb[0].mxu0
      %v699 = vadd.f32 %v615, %v698
      %v700 = vpop.f32.mrb[0].mxu0
      %701 = vmatprep.mubr.f32.mxu0 0.0
      %702 = vmatmul.mubr.f32.gmra.mrb[0].mxu0 %v566
      %v703 = vpop.f32.mrb[0].mxu0
      %v704 = vadd.f32 %v615, %v703
      %v705 = vpop.f32.mrb[0].mxu0
      %706 = vmatprep.mubr.f32.mxu0 0.0
      %707 = vmatmul.mubr.f32.gmra.mrb[0].mxu0 %v567
      %v708 = vpop.f32.mrb[0].mxu0
      %v709 = vadd.f32 %v615, %v708
      %v710 = vpop.f32.mrb[0].mxu0
      %711 = vmatprep.mubr.f32.mxu0 0.0
      %712 = vmatmul.mubr.f32.gmra.mrb[0].mxu0 %v568
      %v713 = vpop.f32.mrb[0].mxu0
      %v714 = vadd.f32 %v615, %v713
      %v715 = vpop.f32.mrb[0].mxu0
      %716 = vmatprep.mubr.f32.mxu0 0.0
      %717 = vmatmul.mubr.f32.gmra.mrb[0].mxu0 %v569
      %v718 = vpop.f32.mrb[0].mxu0
      %v719 = vadd.f32 %v615, %v718
      %v720 = vpop.f32.mrb[0].mxu0
      %721 = vmatprep.mubr.f32.mxu0 0.0
      %722 = vmatmul.mubr.f32.gmra.mrb[0].mxu0 %v570
      %v723 = vpop.f32.mrb[0].mxu0
      %v724 = vadd.f32 %v615, %v723
      %v725 = vpop.f32.mrb[0].mxu0
      %726 = vmatprep.mubr.f32.mxu0 0.0
      %727 = vmatmul.mubr.f32.gmra.mrb[0].mxu0 %v571
      %v728 = vpop.f32.mrb[0].mxu0
      %v729 = vadd.f32 %v615, %v728
      %v730 = vpop.f32.mrb[0].mxu0
      %731 = vmatprep.mubr.f32.mxu0 0.0
      %732 = vmatmul.mubr.f32.gmra.mrb[0].mxu0 %v572
      %v733 = vpop.f32.mrb[0].mxu0
      %v734 = vadd.f32 %v615, %v733
      %v735 = vpop.f32.mrb[0].mxu0
      %736 = vmatprep.mubr.f32.mxu0 0.0
      %737 = vmatmul.mubr.f32.gmra.mrb[0].mxu0 %v573
      %v738 = vpop.f32.mrb[0].mxu0
      %v739 = vadd.f32 %v615, %v738
      %v740 = vpop.f32.mrb[0].mxu0
      %741 = vmatprep.mubr.f32.mxu0 0.0
      %742 = vmatmul.mubr.f32.gmra.mrb[0].mxu0 %v574
      %v743 = vpop.f32.mrb[0].mxu0
      %v744 = vadd.f32 %v615, %v743
      %v745 = vpop.f32.mrb[0].mxu0
      %746 = vmatprep.mubr.f32.mxu0 0.0
      %747 = vmatmul.mubr.f32.gmra.mrb[0].mxu0 %v575
      %v748 = vpop.f32.mrb[0].mxu0
      %v749 = vadd.f32 %v615, %v748
      %v750 = vpop.f32.mrb[0].mxu0
      %751 = vmatprep.mubr.f32.mxu0 0.0
      %752 = vmatmul.mubr.f32.gmra.mrb[0].mxu0 %v576
      %v753 = vpop.f32.mrb[0].mxu0
      %v754 = vadd.f32 %v615, %v753
      %v755 = vpop.f32.mrb[0].mxu0
      %756 = vmatprep.mubr.f32.mxu0 0.0
      %757 = vmatmul.mubr.f32.gmra.mrb[0].mxu0 %v577
      %v758 = vpop.f32.mrb[0].mxu0
      %v759 = vadd.f32 %v615, %v758
      %v760 = vpop.f32.mrb[0].mxu0
      %761 = vmatprep.mubr.f32.mxu0 0.0
      %762 = vmatmul.mubr.f32.gmra.mrb[0].mxu0 %v578
      %v763 = vpop.f32.mrb[0].mxu0
      %v764 = vadd.f32 %v615, %v763
      %v765 = vpop.f32.mrb[0].mxu0
      %766 = vmatprep.mubr.f32.mxu0 0.0
      %767 = vmatmul.mubr.f32.gmra.mrb[0].mxu0 %v579
      %v768 = vpop.f32.mrb[0].mxu0
      %v769 = vadd.f32 %v615, %v768
      %v770 = vpop.f32.mrb[0].mxu0
      %771 = vmatprep.mubr.f32.mxu0 0.0
      %772 = vmatmul.mubr.f32.gmra.mrb[0].mxu0 %v580
      %v773 = vpop.f32.mrb[0].mxu0
      %v774 = vadd.f32 %v615, %v773
      %v775 = vpop.f32.mrb[0].mxu0
      %776 = vmatprep.mubr.f32.mxu0 0.0
      %777 = vmatmul.mubr.f32.gmra.mrb[0].mxu0 %v581
      %v778 = vpop.f32.mrb[0].mxu0
      %v779 = vadd.f32 %v615, %v778
      %v780 = vpop.f32.mrb[0].mxu0
      %781 = vmatprep.mubr.f32.mxu0 0.0
      %782 = vmatmul.mubr.f32.gmra.mrb[0].mxu0 %v582
      %v783 = vpop.f32.mrb[0].mxu0
      %v784 = vadd.f32 %v615, %v783
      %v785 = vpop.f32.mrb[0].mxu0
      %786 = vmatprep.mubr.f32.mxu0 0.0
      %787 = vmatmul.mubr.f32.gmra.mrb[0].mxu0 %v583
      %v788 = vpop.f32.mrb[0].mxu0
      %v789 = vadd.f32 %v615, %v788
      %v790 = vpop.f32.mrb[0].mxu0
      %791 = vmatprep.mubr.f32.mxu0 0.0
      %792 = vmatmul.mubr.f32.gmra.mrb[0].mxu0 %v584
      %v793 = vpop.f32.mrb[0].mxu0
      %v794 = vadd.f32 %v615, %v793
      %v795 = vpop.f32.mrb[0].mxu0
      %796 = vmatprep.mubr.f32.mxu0 0.0
      %797 = vmatmul.mubr.f32.gmra.mrb[0].mxu0 %v585
      %v798 = vpop.f32.mrb[0].mxu0
      %v799 = vadd.f32 %v615, %v798
      %v800 = vpop.f32.mrb[0].mxu0
      %801 = vmatprep.mubr.f32.mxu0 0.0
      %802 = vmatmul.mubr.f32.gmra.mrb[0].mxu0 %v586
      %v803 = vpop.f32.mrb[0].mxu0
      %v804 = vadd.f32 %v615, %v803
      %v805 = vpop.f32.mrb[0].mxu0
      %806 = vmatprep.mubr.f32.mxu0 0.0
      %807 = vmatmul.mubr.f32.gmra.mrb[0].mxu0 %v587
      %v808 = vpop.f32.mrb[0].mxu0
      %v809 = vadd.f32 %v615, %v808
      %v810 = vpop.f32.mrb[0].mxu0
      %811 = vmatprep.mubr.f32.mxu0 0.0
      %812 = vmatmul.mubr.f32.gmra.mrb[0].mxu0 %v588
      %v813 = vpop.f32.mrb[0].mxu0
      %v814 = vadd.f32 %v615, %v813
      %v815 = vpop.f32.mrb[0].mxu0
      %816 = vmatprep.mubr.f32.mxu0 0.0
      %817 = vmatmul.mubr.f32.gmra.mrb[0].mxu0 %v589
      %v818 = vpop.f32.mrb[0].mxu0
      %v819 = vadd.f32 %v615, %v818
      %v820 = vpop.f32.mrb[0].mxu0
      %821 = vmatprep.mubr.f32.mxu0 0.0
      %822 = vmatmul.mubr.f32.gmra.mrb[0].mxu0 %v590
      %v823 = vpop.f32.mrb[0].mxu0
      %v824 = vadd.f32 %v615, %v823
      %v825 = vpop.f32.mrb[0].mxu0
      %826 = vmatprep.mubr.f32.mxu0 0.0
      %827 = vmatmul.mubr.f32.gmra.mrb[0].mxu0 %v591
      %v828 = vpop.f32.mrb[0].mxu0
      %v829 = vadd.f32 %v615, %v828
      %v830 = vpop.f32.mrb[0].mxu0
      %831 = vmatprep.mubr.f32.mxu0 0.0
      %832 = vmatmul.mubr.f32.gmra.mrb[0].mxu0 %v592
      %v833 = vpop.f32.mrb[0].mxu0
      %v834 = vadd.f32 %v615, %v833
      %v835 = vpop.f32.mrb[0].mxu0
      %836 = vmatprep.mubr.f32.mxu0 0.0
      %837 = vmatmul.mubr.f32.gmra.mrb[0].mxu0 %v593
      %v838 = vpop.f32.mrb[0].mxu0
      %v839 = vadd.f32 %v615, %v838
      %v840 = vpop.f32.mrb[0].mxu0
      %841 = vdwg.mxu0
      %v842 = vmax.f32 %v684, 0.0
      %v843 = vmax.f32 %v689, 0.0
      %v844 = vmax.f32 %v694, 0.0
      %v845 = vmax.f32 %v699, 0.0
      %v846 = vmax.f32 %v704, 0.0
      %v847 = vmax.f32 %v709, 0.0
      %v848 = vmax.f32 %v714, 0.0
      %v849 = vmax.f32 %v719, 0.0
      %v850 = vmax.f32 %v724, 0.0
      %v851 = vmax.f32 %v729, 0.0
      %v852 = vmax.f32 %v734, 0.0
      %v853 = vmax.f32 %v739, 0.0
      %v854 = vmax.f32 %v744, 0.0
      %v855 = vmax.f32 %v749, 0.0
      %v856 = vmax.f32 %v754, 0.0
      %v857 = vmax.f32 %v759, 0.0
      %v858 = vmax.f32 %v764, 0.0
      %v859 = vmax.f32 %v769, 0.0
      %v860 = vmax.f32 %v774, 0.0
      %v861 = vmax.f32 %v779, 0.0
      %v862 = vmax.f32 %v784, 0.0
      %v863 = vmax.f32 %v789, 0.0
      %v864 = vmax.f32 %v794, 0.0
      %v865 = vmax.f32 %v799, 0.0
      %v866 = vmax.f32 %v804, 0.0
      %v867 = vmax.f32 %v809, 0.0
      %v868 = vmax.f32 %v814, 0.0
      %v869 = vmax.f32 %v819, 0.0
      %v870 = vmax.f32 %v824, 0.0
      %v871 = vmax.f32 %v829, 0.0
      %v872 = vmax.f32 %v834, 0.0
      %v873 = vmax.f32 %v839, 0.0
      %v874 = vld [vmem:[%s5] sm:$0xff]
      %v875 = vld [vmem:[%s5 + $0x8] sm:$0xff]
      %v876 = vld [vmem:[%s5 + $0x10] sm:$0xff]
      %v877 = vld [vmem:[%s5 + $0x18] sm:$0xff]
      %v878 = vld [vmem:[%s5 + $0x20] sm:$0xff]
      %v879 = vld [vmem:[%s5 + $0x28] sm:$0xff]
      %v880 = vld [vmem:[%s5 + $0x30] sm:$0xff]
      %v881 = vld [vmem:[%s5 + $0x38] sm:$0xff]
      %v882 = vld [vmem:[%s5 + $0x40] sm:$0xff]
      %v883 = vld [vmem:[%s5 + $0x48] sm:$0xff]
      %v884 = vld [vmem:[%s5 + $0x50] sm:$0xff]
      %v885 = vld [vmem:[%s5 + $0x58] sm:$0xff]
      %v886 = vld [vmem:[%s5 + $0x60] sm:$0xff]
      %v887 = vld [vmem:[%s5 + $0x68] sm:$0xff]
      %v888 = vld [vmem:[%s5 + $0x70] sm:$0xff]
      %v889 = vld [vmem:[%s5 + $0x78] sm:$0xff]
      %v890 = vld [vmem:[%s6] sm:$0x1]
      %v892 = vlaneseq
      %v893 = vshrl.u32 %v892, 7
      %v894 = vsub.s32 0, %v893
      %v895 = vrot.slane %v890, %v894
      %897 = vmatprep.subr.mxu0 0.0
      %898 = vmatpush1.msra.mxu0 %v874
      %899 = vmatprep.subr.mxu0 0.0
      %900 = vmatpush1.msra.mxu0 %v875
      %901 = vmatprep.subr.mxu0 0.0
      %902 = vmatpush1.msra.mxu0 %v876
      %903 = vmatprep.subr.mxu0 0.0
      %904 = vmatpush1.msra.mxu0 %v877
      %905 = vmatprep.subr.mxu0 0.0
      %906 = vmatpush1.msra.mxu0 %v878
      %907 = vmatprep.subr.mxu0 0.0
      %908 = vmatpush1.msra.mxu0 %v879
      %909 = vmatprep.subr.mxu0 0.0
      %910 = vmatpush1.msra.mxu0 %v880
      %911 = vmatprep.subr.mxu0 0.0
      %912 = vmatpush1.msra.mxu0 %v881
      %913 = vmatprep.subr.mxu0 0.0
      %914 = vmatpush1.msra.mxu0 %v882
      %915 = vmatprep.subr.mxu0 0.0
      %916 = vmatpush1.msra.mxu0 %v883
      %917 = vmatprep.subr.mxu0 0.0
      %918 = vmatpush1.msra.mxu0 %v884
      %919 = vmatprep.subr.mxu0 0.0
      %920 = vmatpush1.msra.mxu0 %v885
      %921 = vmatprep.subr.mxu0 0.0
      %922 = vmatpush1.msra.mxu0 %v886
      %923 = vmatprep.subr.mxu0 0.0
      %924 = vmatpush1.msra.mxu0 %v887
      %925 = vmatprep.subr.mxu0 0.0
      %926 = vmatpush1.msra.mxu0 %v888
      %927 = vmatprep.subr.mxu0 0.0
      %928 = vmatpush1.msra.mxu0 %v889
      %929 = vmatprep.subr.mxu0 0.0
      %930 = vmatpush1.msra.mxu0 0.0
      %931 = vmatprep.subr.mxu0 0.0
      %932 = vmatpush1.msra.mxu0 0.0
      %933 = vmatprep.subr.mxu0 0.0
      %934 = vmatpush1.msra.mxu0 0.0
      %935 = vmatprep.subr.mxu0 0.0
      %936 = vmatpush1.msra.mxu0 0.0
      %937 = vmatprep.subr.mxu0 0.0
      %938 = vmatpush1.msra.mxu0 0.0
      %939 = vmatprep.subr.mxu0 0.0
      %940 = vmatpush1.msra.mxu0 0.0
      %941 = vmatprep.subr.mxu0 0.0
      %942 = vmatpush1.msra.mxu0 0.0
      %943 = vmatprep.subr.mxu0 0.0
      %944 = vmatpush1.msra.mxu0 0.0
      %945 = vmatprep.subr.mxu0 0.0
      %946 = vmatpush1.msra.mxu0 0.0
      %947 = vmatprep.subr.mxu0 0.0
      %948 = vmatpush1.msra.mxu0 0.0
      %949 = vmatprep.subr.mxu0 0.0
      %950 = vmatpush1.msra.mxu0 0.0
      %951 = vmatprep.subr.mxu0 0.0
      %952 = vmatpush1.msra.mxu0 0.0
      %953 = vmatprep.subr.mxu0 0.0
      %954 = vmatpush1.msra.mxu0 0.0
      %955 = vmatprep.subr.mxu0 0.0
      %956 = vmatpush1.msra.mxu0 0.0
      %957 = vmatprep.subr.mxu0 0.0
      %958 = vmatpush1.msra.mxu0 0.0
      %959 = vmatprep.subr.mxu0 0.0
      %960 = vmatpush1.msra.mxu0 0.0
      %961 = vmatprep.mubr.f32.mxu0 0.0
      %962 = vmatmul.mubr.f32.gmra.mrb[0].mxu0 %v842
      %v963 = vpop.f32.mrb[0].mxu0
      %v964 = vadd.f32 %v895, %v963
      %v965 = vpop.f32.mrb[0].mxu0
      %966 = vmatprep.mubr.f32.mxu0 0.0
      %967 = vmatmul.mubr.f32.gmra.mrb[0].mxu0 %v843
      %v968 = vpop.f32.mrb[0].mxu0
      %v969 = vadd.f32 %v895, %v968
      %v970 = vpop.f32.mrb[0].mxu0
      %971 = vmatprep.mubr.f32.mxu0 0.0
      %972 = vmatmul.mubr.f32.gmra.mrb[0].mxu0 %v844
      %v973 = vpop.f32.mrb[0].mxu0
      %v974 = vadd.f32 %v895, %v973
      %v975 = vpop.f32.mrb[0].mxu0
      %976 = vmatprep.mubr.f32.mxu0 0.0
      %977 = vmatmul.mubr.f32.gmra.mrb[0].mxu0 %v845
      %v978 = vpop.f32.mrb[0].mxu0
      %v979 = vadd.f32 %v895, %v978
      %v980 = vpop.f32.mrb[0].mxu0
      %981 = vmatprep.mubr.f32.mxu0 0.0
      %982 = vmatmul.mubr.f32.gmra.mrb[0].mxu0 %v846
      %v983 = vpop.f32.mrb[0].mxu0
      %v984 = vadd.f32 %v895, %v983
      %v985 = vpop.f32.mrb[0].mxu0
      %986 = vmatprep.mubr.f32.mxu0 0.0
      %987 = vmatmul.mubr.f32.gmra.mrb[0].mxu0 %v847
      %v988 = vpop.f32.mrb[0].mxu0
      %v989 = vadd.f32 %v895, %v988
      %v990 = vpop.f32.mrb[0].mxu0
      %991 = vmatprep.mubr.f32.mxu0 0.0
      %992 = vmatmul.mubr.f32.gmra.mrb[0].mxu0 %v848
      %v993 = vpop.f32.mrb[0].mxu0
      %v994 = vadd.f32 %v895, %v993
      %v995 = vpop.f32.mrb[0].mxu0
      %996 = vmatprep.mubr.f32.mxu0 0.0
      %997 = vmatmul.mubr.f32.gmra.mrb[0].mxu0 %v849
      %v998 = vpop.f32.mrb[0].mxu0
      %v999 = vadd.f32 %v895, %v998
      %v1000 = vpop.f32.mrb[0].mxu0
      %1001 = vmatprep.mubr.f32.mxu0 0.0
      %1002 = vmatmul.mubr.f32.gmra.mrb[0].mxu0 %v850
      %v1003 = vpop.f32.mrb[0].mxu0
      %v1004 = vadd.f32 %v895, %v1003
      %v1005 = vpop.f32.mrb[0].mxu0
      %1006 = vmatprep.mubr.f32.mxu0 0.0
      %1007 = vmatmul.mubr.f32.gmra.mrb[0].mxu0 %v851
      %v1008 = vpop.f32.mrb[0].mxu0
      %v1009 = vadd.f32 %v895, %v1008
      %v1010 = vpop.f32.mrb[0].mxu0
      %1011 = vmatprep.mubr.f32.mxu0 0.0
      %1012 = vmatmul.mubr.f32.gmra.mrb[0].mxu0 %v852
      %v1013 = vpop.f32.mrb[0].mxu0
      %v1014 = vadd.f32 %v895, %v1013
      %v1015 = vpop.f32.mrb[0].mxu0
      %1016 = vmatprep.mubr.f32.mxu0 0.0
      %1017 = vmatmul.mubr.f32.gmra.mrb[0].mxu0 %v853
      %v1018 = vpop.f32.mrb[0].mxu0
      %v1019 = vadd.f32 %v895, %v1018
      %v1020 = vpop.f32.mrb[0].mxu0
      %1021 = vmatprep.mubr.f32.mxu0 0.0
      %1022 = vmatmul.mubr.f32.gmra.mrb[0].mxu0 %v854
      %v1023 = vpop.f32.mrb[0].mxu0
      %v1024 = vadd.f32 %v895, %v1023
      %v1025 = vpop.f32.mrb[0].mxu0
      %1026 = vmatprep.mubr.f32.mxu0 0.0
      %1027 = vmatmul.mubr.f32.gmra.mrb[0].mxu0 %v855
      %v1028 = vpop.f32.mrb[0].mxu0
      %v1029 = vadd.f32 %v895, %v1028
      %v1030 = vpop.f32.mrb[0].mxu0
      %1031 = vmatprep.mubr.f32.mxu0 0.0
      %1032 = vmatmul.mubr.f32.gmra.mrb[0].mxu0 %v856
      %v1033 = vpop.f32.mrb[0].mxu0
      %v1034 = vadd.f32 %v895, %v1033
      %v1035 = vpop.f32.mrb[0].mxu0
      %1036 = vmatprep.mubr.f32.mxu0 0.0
      %1037 = vmatmul.mubr.f32.gmra.mrb[0].mxu0 %v857
      %v1038 = vpop.f32.mrb[0].mxu0
      %v1039 = vadd.f32 %v895, %v1038
      %v1040 = vpop.f32.mrb[0].mxu0
      %1041 = vmatprep.mubr.f32.mxu0 0.0
      %1042 = vmatmul.mubr.f32.gmra.mrb[0].mxu0 %v858
      %v1043 = vpop.f32.mrb[0].mxu0
      %v1044 = vadd.f32 %v895, %v1043
      %v1045 = vpop.f32.mrb[0].mxu0
      %1046 = vmatprep.mubr.f32.mxu0 0.0
      %1047 = vmatmul.mubr.f32.gmra.mrb[0].mxu0 %v859
      %v1048 = vpop.f32.mrb[0].mxu0
      %v1049 = vadd.f32 %v895, %v1048
      %v1050 = vpop.f32.mrb[0].mxu0
      %1051 = vmatprep.mubr.f32.mxu0 0.0
      %1052 = vmatmul.mubr.f32.gmra.mrb[0].mxu0 %v860
      %v1053 = vpop.f32.mrb[0].mxu0
      %v1054 = vadd.f32 %v895, %v1053
      %v1055 = vpop.f32.mrb[0].mxu0
      %1056 = vmatprep.mubr.f32.mxu0 0.0
      %1057 = vmatmul.mubr.f32.gmra.mrb[0].mxu0 %v861
      %v1058 = vpop.f32.mrb[0].mxu0
      %v1059 = vadd.f32 %v895, %v1058
      %v1060 = vpop.f32.mrb[0].mxu0
      %1061 = vmatprep.mubr.f32.mxu0 0.0
      %1062 = vmatmul.mubr.f32.gmra.mrb[0].mxu0 %v862
      %v1063 = vpop.f32.mrb[0].mxu0
      %v1064 = vadd.f32 %v895, %v1063
      %v1065 = vpop.f32.mrb[0].mxu0
      %1066 = vmatprep.mubr.f32.mxu0 0.0
      %1067 = vmatmul.mubr.f32.gmra.mrb[0].mxu0 %v863
      %v1068 = vpop.f32.mrb[0].mxu0
      %v1069 = vadd.f32 %v895, %v1068
      %v1070 = vpop.f32.mrb[0].mxu0
      %1071 = vmatprep.mubr.f32.mxu0 0.0
      %1072 = vmatmul.mubr.f32.gmra.mrb[0].mxu0 %v864
      %v1073 = vpop.f32.mrb[0].mxu0
      %v1074 = vadd.f32 %v895, %v1073
      %v1075 = vpop.f32.mrb[0].mxu0
      %1076 = vmatprep.mubr.f32.mxu0 0.0
      %1077 = vmatmul.mubr.f32.gmra.mrb[0].mxu0 %v865
      %v1078 = vpop.f32.mrb[0].mxu0
      %v1079 = vadd.f32 %v895, %v1078
      %v1080 = vpop.f32.mrb[0].mxu0
      %1081 = vmatprep.mubr.f32.mxu0 0.0
      %1082 = vmatmul.mubr.f32.gmra.mrb[0].mxu0 %v866
      %v1083 = vpop.f32.mrb[0].mxu0
      %v1084 = vadd.f32 %v895, %v1083
      %v1085 = vpop.f32.mrb[0].mxu0
      %1086 = vmatprep.mubr.f32.mxu0 0.0
      %1087 = vmatmul.mubr.f32.gmra.mrb[0].mxu0 %v867
      %v1088 = vpop.f32.mrb[0].mxu0
      %v1089 = vadd.f32 %v895, %v1088
      %v1090 = vpop.f32.mrb[0].mxu0
      %1091 = vmatprep.mubr.f32.mxu0 0.0
      %1092 = vmatmul.mubr.f32.gmra.mrb[0].mxu0 %v868
      %v1093 = vpop.f32.mrb[0].mxu0
      %v1094 = vadd.f32 %v895, %v1093
      %v1095 = vpop.f32.mrb[0].mxu0
      %1096 = vmatprep.mubr.f32.mxu0 0.0
      %1097 = vmatmul.mubr.f32.gmra.mrb[0].mxu0 %v869
      %v1098 = vpop.f32.mrb[0].mxu0
      %v1099 = vadd.f32 %v895, %v1098
      %v1100 = vpop.f32.mrb[0].mxu0
      %1101 = vmatprep.mubr.f32.mxu0 0.0
      %1102 = vmatmul.mubr.f32.gmra.mrb[0].mxu0 %v870
      %v1103 = vpop.f32.mrb[0].mxu0
      %v1104 = vadd.f32 %v895, %v1103
      %v1105 = vpop.f32.mrb[0].mxu0
      %1106 = vmatprep.mubr.f32.mxu0 0.0
      %1107 = vmatmul.mubr.f32.gmra.mrb[0].mxu0 %v871
      %v1108 = vpop.f32.mrb[0].mxu0
      %v1109 = vadd.f32 %v895, %v1108
      %v1110 = vpop.f32.mrb[0].mxu0
      %1111 = vmatprep.mubr.f32.mxu0 0.0
      %1112 = vmatmul.mubr.f32.gmra.mrb[0].mxu0 %v872
      %v1113 = vpop.f32.mrb[0].mxu0
      %v1114 = vadd.f32 %v895, %v1113
      %v1115 = vpop.f32.mrb[0].mxu0
      %1116 = vmatprep.mubr.f32.mxu0 0.0
      %1117 = vmatmul.mubr.f32.gmra.mrb[0].mxu0 %v873
      %v1118 = vpop.f32.mrb[0].mxu0
      %v1119 = vadd.f32 %v895, %v1118
      %v1120 = vpop.f32.mrb[0].mxu0
      %1121 = vdwg.mxu0
      %1122 = vst [vmem:[%s280] sm:$0xff] %v964
      %1123 = vst [vmem:[%s280 + $0x8] sm:$0xff] %v969
      %1124 = vst [vmem:[%s280 + $0x10] sm:$0xff] %v974
      %1125 = vst [vmem:[%s280 + $0x18] sm:$0xff] %v979
      %1126 = vst [vmem:[%s280 + $0x20] sm:$0xff] %v984
      %1127 = vst [vmem:[%s280 + $0x28] sm:$0xff] %v989
      %1128 = vst [vmem:[%s280 + $0x30] sm:$0xff] %v994
      %1129 = vst [vmem:[%s280 + $0x38] sm:$0xff] %v999
      %1130 = vst [vmem:[%s280 + $0x40] sm:$0xff] %v1004
      %1131 = vst [vmem:[%s280 + $0x48] sm:$0xff] %v1009
      %1132 = vst [vmem:[%s280 + $0x50] sm:$0xff] %v1014
      %1133 = vst [vmem:[%s280 + $0x58] sm:$0xff] %v1019
      %1134 = vst [vmem:[%s280 + $0x60] sm:$0xff] %v1024
      %1135 = vst [vmem:[%s280 + $0x68] sm:$0xff] %v1029
      %1136 = vst [vmem:[%s280 + $0x70] sm:$0xff] %v1034
      %1137 = vst [vmem:[%s280 + $0x78] sm:$0xff] %v1039
      %1138 = vst [vmem:[%s280 + $0x80] sm:$0xff] %v1044
      %1139 = vst [vmem:[%s280 + $0x88] sm:$0xff] %v1049
      %1140 = vst [vmem:[%s280 + $0x90] sm:$0xff] %v1054
      %1141 = vst [vmem:[%s280 + $0x98] sm:$0xff] %v1059
      %1142 = vst [vmem:[%s280 + $0xa0] sm:$0xff] %v1064
      %1143 = vst [vmem:[%s280 + $0xa8] sm:$0xff] %v1069
      %1144 = vst [vmem:[%s280 + $0xb0] sm:$0xff] %v1074
      %1145 = vst [vmem:[%s280 + $0xb8] sm:$0xff] %v1079
      %1146 = vst [vmem:[%s280 + $0xc0] sm:$0xff] %v1084
      %1147 = vst [vmem:[%s280 + $0xc8] sm:$0xff] %v1089
      %1148 = vst [vmem:[%s280 + $0xd0] sm:$0xff] %v1094
      %1149 = vst [vmem:[%s280 + $0xd8] sm:$0xff] %v1099
      %1150 = vst [vmem:[%s280 + $0xe0] sm:$0xff] %v1104
      %1151 = vst [vmem:[%s280 + $0xe8] sm:$0xff] %v1109
      %1152 = vst [vmem:[%s280 + $0xf0] sm:$0xff] %v1114
      %1153 = vst [vmem:[%s280 + $0xf8] sm:$0xff] %v1119
      %s1154 = smul.u32 32, %s18
      %p1155 = scmp.lt.s32.totalorder %s1154, 63
      %s1156 = scalar_select %p1155, %s1154, 63
      %s1157 = smul.addr %s1156, 8
      %s1158 = scalar_lea.vmem %s7, %s1157
      // Predicated region
      $region49: #{mlp_forward.1} parent=47 // pred_check
        %p1159 = pneg %p188
      $region50: #{mlp_forward.1} parent=47 // pred_check_branch
        %1161 = sbr.rel (%p1159) target = $region52
      $region51: #{mlp_forward.1} parent=47 // pred_region
        %s1162 = smul.u32 32, %s18
      $region52: #{mlp_forward.1} parent=47 // pred_fallthru
        _
    $region48: #{mlp_forward.1} parent=5 // pred_fallthru
      _
    %p1163 = scmp.le.s32.totalorder 2, %s13
    // Predicated region
    $region53: #{mlp_forward.1} parent=5 // pred_check
      %p1164 = pneg %p1163
    $region54: #{mlp_forward.1} parent=5 // pred_check_branch
      %1166 = sbr.rel (%p1164) target = $region56
    $region55: #{mlp_forward.1} parent=5 // pred_region
      %s1167 = ssub.s32 %s13, 2
      // Predicated region
      $region57: #{mlp_forward.1} parent=55 // pred_check
        %p1168 = pneg %p194
      $region58: #{mlp_forward.1} parent=55 // pred_check_branch
        %1170 = sbr.rel (%p1168) target = $region60
      $region59: #{mlp_forward.1} parent=55 // pred_region
        %s1171 = smul.u32 32, %s19
        %p1172 = scmp.lt.s32.totalorder %s1171, 63
        %s1173 = scalar_select %p1172, %s1171, 63
        %s1174 = smul.addr %s1173, 8
        %s1175 = scalar_lea.vmem %s7, %s1174
      $region60: #{mlp_forward.1} parent=55 // pred_fallthru
        _
    $region56: #{mlp_forward.1} parent=5 // pred_fallthru
      _
  $region6: #{mlp_forward.1} parent=0 // loop_footer
    %s17 = sadd.s32 1, %s13
  $region7: #{mlp_forward.1} parent=0 // loop_footer_branch
    %12 = sbr.rel target = $region3
  $region8: #{mlp_forward.1} parent=0 // loop_exit
    _

</llo_original>
